<compile_context>
chip_gen: v7x
topology: tpu7x:2x2x1
jax: 0.10.0
libtpu: 0.0.40
codegen_flags: <defaults>
</compile_context>

<pallas_src>
import jax
import jax.numpy as jnp
from jax import lax
from jax.experimental import pallas as pl
from jax.experimental.pallas import tpu as pltpu

MAX_LABEL_LEN = 128  # fixed UTF-8 byte length per label (== MXU contraction width)
_QUERY_TILE = 128    # query-tile rows (== lane width, keeps output lane-dense)
_VOCAB_TILE = 512    # max vocab-tile rows (128 KiB bf16 per buffer)


def _round_up(x, m):
    return (x + m - 1) // m * m


def _lookup_kernel(q_ref, v_ref, qn_ref, o_ref):
    """One (query-tile, vocab-tile) step of the label -> index lookup.

    q_ref : [TB, L]  bf16   query byte codes
    v_ref : [TN, L]  bf16   vocab byte codes
    qn_ref: [1, TB]  f32    per-query squared norms (exact integers)
    o_ref : [1, TB]  int32  running best-match index (resident over the
                            vocab-tile grid axis, -1 = no match yet)
    """
    j = pl.program_id(1)

    @pl.when(j == 0)
    def _():
        o_ref[...] = jnp.full_like(o_ref, -1)

    q = q_ref[...]                                     # [TB, L] bf16
    v = v_ref[...]                                     # [TN, L] bf16
    qn = qn_ref[...]                                   # [1, TB] f32

    # MXU: cross products over the byte axis -> [TN, TB] (exact in f32).
    vq = lax.dot_general(v, q, (((1,), (1,)), ((), ())),
                         preferred_element_type=jnp.float32)

    # Vocab-row squared norms (VPU + small cross-lane reduce), exact in f32.
    vf = v.astype(jnp.float32)
    vn = jnp.sum(vf * vf, axis=-1, keepdims=True)      # [TN, 1]

    # Squared distance; zero iff the byte rows are identical.
    d2 = (vn - 2.0 * vq) + qn                          # [TN, TB]
    match = d2 == 0.0

    tn = v.shape[0]
    n_global = j * tn + lax.broadcasted_iota(jnp.int32, match.shape, 0)
    cand = jnp.where(match, n_global, -1)              # [TN, TB]

    # Fused reduction: running max over matched indices (-1 == not found).
    o_ref[...] = jnp.maximum(o_ref[...], jnp.max(cand, axis=0, keepdims=True))


def lookup_indices_pallas(queries_enc: jnp.ndarray, vocab_enc: jnp.ndarray) -> jnp.ndarray:
    """queries_enc: [B, L] int32 byte codes, vocab_enc: [N, L] int32 -> [B] int32 ids."""
    B, L = queries_enc.shape
    N, Lv = vocab_enc.shape
    assert L == Lv == MAX_LABEL_LEN

    TB = _QUERY_TILE
    B_pad = _round_up(B, TB)
    TN = min(_VOCAB_TILE, _round_up(N, 128))
    N_pad = _round_up(N, TN)

    # Pad queries with zero rows (sliced off afterwards).  Pad the vocab with
    # 0xFF rows: 0xFF never occurs in valid UTF-8, so pad rows cannot match.
    q = jnp.pad(queries_enc, ((0, B_pad - B), (0, 0)))
    v = jnp.pad(vocab_enc, ((0, N_pad - N), (0, 0)), constant_values=255)

    # Exact per-query squared norms in f32 (bytes < 256, L = 128 => < 2^24).
    qf = q.astype(jnp.float32)
    qn = jnp.sum(qf * qf, axis=-1)[None, :]            # [1, B_pad]

    q_bf = q.astype(jnp.bfloat16)
    v_bf = v.astype(jnp.bfloat16)

    n_b = B_pad // TB
    n_n = N_pad // TN

    out = pl.pallas_call(
        _lookup_kernel,
        out_shape=jax.ShapeDtypeStruct((1, B_pad), jnp.int32),
        grid_spec=pltpu.PrefetchScalarGridSpec(
            num_scalar_prefetch=0,
            grid=(n_b, n_n),
            in_specs=[
                pl.BlockSpec((TB, L), lambda i, j: (i, 0)),   # queries
                pl.BlockSpec((TN, L), lambda i, j: (j, 0)),   # vocab
                pl.BlockSpec((1, TB), lambda i, j: (0, i)),   # query norms
            ],
            out_specs=pl.BlockSpec((1, TB), lambda i, j: (0, i)),
        ),
        compiler_params=pltpu.CompilerParams(
            dimension_semantics=("parallel", "arbitrary"),
        ),
        cost_estimate=pl.CostEstimate(
            flops=2 * B_pad * N_pad * L,
            transcendentals=0,
            bytes_accessed=(B_pad * L + n_b * N_pad * L) * 2 + B_pad * 8,
        ),
    )(q_bf, v_bf, qn)
    return out[0, :B]


def _encode_labels(labels, max_len=MAX_LABEL_LEN):
    """Encode strings as an [len(labels), max_len] int32 array of UTF-8 byte
    codes, zero-padded.  Handles arbitrary Unicode (bytes stay in 0..255)."""
    # TODO(synk): labels longer than 128 UTF-8 bytes are truncated; two labels
    # sharing a 128-byte prefix would collide.
    rows = []
    for s in labels:
        b = s.encode("utf-8")[:max_len]
        codes = list(b) + [0] * (max_len - len(b))
        rows.append(codes)
    return jnp.asarray(rows, dtype=jnp.int32)


class LabelToIndex:
    """JAX/Pallas re-implementation of torchtext.transforms.LabelToIndex.

    Only label_names (in-memory) construction is supported; label_path is
    file I/O glue and intentionally omitted in this self-contained script.
    """

    def __init__(self, label_names=None, sort_names=False):
        assert label_names, "label_names is required"
        # TODO(synk): label_path (file-based) construction omitted (host file I/O).
        if sort_names:
            label_names = sorted(label_names)
        self._label_names = list(label_names)
        self._stoi = {s: i for i, s in enumerate(self._label_names)}
        self._vocab_enc = _encode_labels(self._label_names)

    @property
    def label_names(self):
        return self._label_names

    def forward(self, input):
        if isinstance(input, str):
            # Per perf review: a B=1 kernel launch is pure overhead; the
            # single-string path is an exact host-side lookup (same semantics).
            if input not in self._stoi:
                raise RuntimeError(f"label not found: {input!r}")
            return self._stoi[input]
        elif isinstance(input, (list, tuple)) and all(isinstance(s, str) for s in input):
            q = _encode_labels(list(input))
            ids = lookup_indices_pallas(q, self._vocab_enc)
            return [int(i) for i in jax.device_get(ids)]
        else:
            raise TypeError("Input type not supported")

    __call__ = forward


if __name__ == "__main__":
    # Deterministic "parameters": a fixed vocabulary of unique label names.
    label_names = [
        "negative", "neutral", "positive", "spam",
        "ham", "urgent", "normal", "other",
    ]
    transform = LabelToIndex(label_names=label_names, sort_names=False)

    # Deterministic example inputs: sample query labels via PRNGKey(0).
    key = jax.random.PRNGKey(0)
    B = 8
    query_idx = jax.random.randint(key, (B,), 0, len(label_names))
    query_idx_host = [int(i) for i in jax.device_get(query_idx)]
    queries = [label_names[i] for i in query_idx_host]

    # Run the Pallas kernel (list-of-strings path) and block on the result.
    q_enc = _encode_labels(queries)
    ids_dev = lookup_indices_pallas(q_enc, transform._vocab_enc)
    ids_dev = jax.block_until_ready(ids_dev)
    ids = [int(i) for i in jax.device_get(ids_dev)]

    # Also exercise the module's forward() on both input types.
    ids_via_forward = transform(queries)
    single_id = transform("urgent")

    assert ids == query_idx_host, (ids, query_idx_host)
    assert ids_via_forward == query_idx_host, (ids_via_forward, query_idx_host)
    assert single_id == label_names.index("urgent")

    print("KERNEL_OK")
</pallas_src>

<mosaic_0001>
module attributes {stable_mosaic.version = 11 : i64} {
  func.func @_lookup_kernel(%arg0: i32, %arg1: i32, %arg2: memref<128x128xbf16, #tpu.memory_space<vmem>>, %arg3: memref<128x128xbf16, #tpu.memory_space<vmem>>, %arg4: memref<1x128xf32, #tpu.memory_space<vmem>>, %arg5: memref<1x128xi32, #tpu.memory_space<vmem>>) attributes {dimension_semantics = [#tpu.dimension_semantics<parallel>, #tpu.dimension_semantics<arbitrary>], iteration_bounds = array<i64: 1, 1>, scalar_prefetch = 0 : i64, scratch_operands = 0 : i64, tpu.core_type = #tpu.core_type<tc>, window_params = [{transform_indices = @transform_0, window_bounds = array<i64: 128, 128>}, {transform_indices = @transform_1, window_bounds = array<i64: 128, 128>}, {transform_indices = @transform_2, window_bounds = array<i64: 1, 128>}, {transform_indices = @transform_3, window_bounds = array<i64: 1, 128>}]} {
    %c0_i32 = arith.constant 0 : i32
    %0 = arith.cmpi eq, %arg1, %c0_i32 : i32
    %1 = arith.extui %0 : i1 to i32
    %c0_i32_0 = arith.constant 0 : i32
    %2 = arith.cmpi ne, %1, %c0_i32_0 : i32
    scf.if %2 {
      %c-1_i32_14 = arith.constant -1 : i32
      %30 = vector.broadcast %c-1_i32_14 : i32 to vector<1x128xi32>
      %c0_15 = arith.constant 0 : index
      %c0_16 = arith.constant 0 : index
      %31 = vector.load %arg5[%c0_15, %c0_16] : memref<1x128xi32, #tpu.memory_space<vmem>>, vector<1x128xi32>
      tpu.vector_store %arg5[%c0_15, %c0_16], %30 {strides = array<i32>} : memref<1x128xi32, #tpu.memory_space<vmem>>, vector<1x128xi32>,
    } else {
    }
    %c0 = arith.constant 0 : index
    %c0_1 = arith.constant 0 : index
    %3 = vector.load %arg2[%c0, %c0_1] : memref<128x128xbf16, #tpu.memory_space<vmem>>, vector<128x128xbf16>
    %c0_2 = arith.constant 0 : index
    %c0_3 = arith.constant 0 : index
    %4 = vector.load %arg3[%c0_2, %c0_3] : memref<128x128xbf16, #tpu.memory_space<vmem>>, vector<128x128xbf16>
    %c0_4 = arith.constant 0 : index
    %c0_5 = arith.constant 0 : index
    %5 = vector.load %arg4[%c0_4, %c0_5] : memref<1x128xf32, #tpu.memory_space<vmem>>, vector<1x128xf32>
    %cst = arith.constant dense<0.000000e+00> : vector<128x128xf32>
    %6 = tpu.matmul %4, %3, %cst {dimension_numbers = #tpu.dot_dimension_numbers<[1], [1], [0], [0], [0, 0, 1, 0], [], []>} : vector<128x128xbf16>, vector<128x128xbf16>, vector<128x128xf32> -> vector<128x128xf32>
    %7 = arith.extf %4 : vector<128x128xbf16> to vector<128x128xf32>
    %8 = arith.mulf %7, %7 : vector<128x128xf32>
    %cst_6 = arith.constant dense<0.000000e+00> : vector<128xf32>
    %9 = vector.multi_reduction <add>, %8, %cst_6 [1] : vector<128x128xf32> to vector<128xf32>
    %10 = vector.shape_cast %9 : vector<128xf32> to vector<128x1xf32>
    %cst_7 = arith.constant 2.000000e+00 : f32
    %11 = vector.broadcast %cst_7 : f32 to vector<128x128xf32>
    %12 = arith.mulf %11, %6 : vector<128x128xf32>
    %13 = vector.broadcast %10 : vector<128x1xf32> to vector<128x128xf32>
    %14 = arith.subf %13, %12 : vector<128x128xf32>
    %15 = vector.broadcast %5 : vector<1x128xf32> to vector<128x128xf32>
    %16 = arith.addf %14, %15 : vector<128x128xf32>
    %cst_8 = arith.constant 0.000000e+00 : f32
    %17 = vector.broadcast %cst_8 : f32 to vector<128x128xf32>
    %18 = arith.cmpf oeq, %16, %17 : vector<128x128xf32>
    %c128_i32 = arith.constant 128 : i32
    %19 = arith.muli %arg1, %c128_i32 : i32
    %20 = tpu.iota {dimensions = array<i32: 0>} : vector<128x128xi32>
    %21 = vector.broadcast %19 : i32 to vector<128x128xi32>
    %22 = arith.addi %21, %20 : vector<128x128xi32>
    %c-1_i32 = arith.constant -1 : i32
    %23 = vector.broadcast %c-1_i32 : i32 to vector<128x128xi32>
    %24 = arith.select %18, %22, %23 : vector<128x128xi1>, vector<128x128xi32>
    %c0_9 = arith.constant 0 : index
    %c0_10 = arith.constant 0 : index
    %25 = vector.load %arg5[%c0_9, %c0_10] : memref<1x128xi32, #tpu.memory_space<vmem>>, vector<1x128xi32>
    %cst_11 = arith.constant dense<-2147483648> : vector<128xi32>
    %26 = vector.multi_reduction <maxsi>, %24, %cst_11 [0] : vector<128x128xi32> to vector<128xi32>
    %27 = vector.shape_cast %26 : vector<128xi32> to vector<1x128xi32>
    %28 = arith.maxsi %25, %27 : vector<1x128xi32>
    %c0_12 = arith.constant 0 : index
    %c0_13 = arith.constant 0 : index
    %29 = vector.load %arg5[%c0_12, %c0_13] : memref<1x128xi32, #tpu.memory_space<vmem>>, vector<1x128xi32>
    tpu.vector_store %arg5[%c0_12, %c0_13], %28 {strides = array<i32>} : memref<1x128xi32, #tpu.memory_space<vmem>>, vector<1x128xi32>,
    return
  }
  func.func @transform_0(%arg0: i32, %arg1: i32) -> (i32, i32) {
    %c0_i32 = arith.constant 0 : i32
    %c0_i32_0 = arith.constant 0 : i32
    return %arg0, %c0_i32 : i32, i32
  }
  func.func @transform_1(%arg0: i32, %arg1: i32) -> (i32, i32) {
    %c0_i32 = arith.constant 0 : i32
    %c0_i32_0 = arith.constant 0 : i32
    return %arg1, %c0_i32 : i32, i32
  }
  func.func @transform_2(%arg0: i32, %arg1: i32) -> (i32, i32) {
    %c0_i32 = arith.constant 0 : i32
    %c0_i32_0 = arith.constant 0 : i32
    return %c0_i32, %arg0 : i32, i32
  }
  func.func @transform_3(%arg0: i32, %arg1: i32) -> (i32, i32) {
    %c0_i32 = arith.constant 0 : i32
    %c0_i32_0 = arith.constant 0 : i32
    return %c0_i32, %arg0 : i32, i32
  }
}

</mosaic_0001>

<llo_original>
// kernel: tpu_custom_call.1
$region0: #{tpu_custom_call.1}
  #allocation0 [shape = 'u32[]', space=smem, size = 0x4, offset = 0x4, fixed_abs, tag = 'smem constant byte address 0x4 - core index']
  #allocation1 [shape = 'u32[144,128]{1,0:T(1,128)}', space=vmem, size = 0x12000, scoped, tag = 'internal scratch']
  %s0 = inlined_call_operand.hbm [shape: bf16[128,128], index: 0, kind: input, shape index: {}]
  %s1 = inlined_call_operand.hbm [shape: bf16[128,128], index: 1, kind: input, shape index: {}]
  %s2 = inlined_call_operand.vmem [shape: f32[1,128], index: 2, kind: input, shape index: {}]
  %s3 = inlined_call_operand.hbm [shape: s32[1,128], index: 3, kind: output, shape index: {}]
  %s4 = sld [smem:[#allocation0]]
  $region34: #{tpu_custom_call.1} parent=0
    _
  %s6 = ssub.s32 1, %s4
  %s7 = scalar_select 0, %s6, %s4
  $region1: #{tpu_custom_call.1} parent=0
    #allocation2 [shape = 'u8[32768]{0}', space=vmem, size = 0x8000, scoped, tag = 'input window, operand 0, single buffered']
    #allocation3 [shape = 's32[1]{0}', space=sflag, size = 0x4, scoped, tag = 'scoped memory for tpu_custom_call.1']
    #allocation4 [shape = 's32[1]{0}', space=sflag, size = 0x4, scoped, tag = 'scoped memory for tpu_custom_call.1']
    #allocation5 [shape = 'u8[32768]{0}', space=vmem, size = 0x8000, scoped, tag = 'input window, operand 1, single buffered']
    #allocation6 [shape = 's32[1]{0}', space=sflag, size = 0x4, scoped, tag = 'scoped memory for tpu_custom_call.1']
    #allocation7 [shape = 'u8[512]{0}', space=vmem, size = 0x400, scoped, tag = 'output window, operand 0, single buffered']
    %8 = vsyncpa [#allocation3], 0
    %9 = vsyncpa [#allocation6], 0
    %10 = vsyncpa [#allocation4], 0
    // Predicated region
    $region2: #{tpu_custom_call.1} parent=1 // pred_check
      _
    $region3: #{tpu_custom_call.1} parent=1 // pred_check_branch
      %12 = sbr.rel (0) target = $region5
    $region4: #{tpu_custom_call.1} parent=1 // pred_region
      %s14 = ssub.s32 1024, 1024
      %15 = vsyncadd [#allocation3], %s14
      %s16 = sshll.u32 [#allocation2], 4
      %s17 = int_to_ptr.vmem [resolvable:$true] %s16
      %22 = dma.hbm_to_vmem [thread:$0]  %s0, 1024, %s17, [#allocation3], 64, 64, 4
    $region5: #{tpu_custom_call.1} parent=1 // pred_fallthru
      _
    // Predicated region
    $region6: #{tpu_custom_call.1} parent=1 // pred_check
      _
    $region7: #{tpu_custom_call.1} parent=1 // pred_check_branch
      %24 = sbr.rel (0) target = $region9
    $region8: #{tpu_custom_call.1} parent=1 // pred_region
      %s26 = ssub.s32 1024, 1024
      %27 = vsyncadd [#allocation6], %s26
      %s28 = sshll.u32 [#allocation5], 4
      %s29 = int_to_ptr.vmem [resolvable:$true] %s28
      %34 = dma.hbm_to_vmem [thread:$0]  %s1, 1024, %s29, [#allocation6], 64, 64, 4
    $region9: #{tpu_custom_call.1} parent=1 // pred_fallthru
      _
    // Predicated region
    $region10: #{tpu_custom_call.1} parent=1 // pred_check
      _
    $region11: #{tpu_custom_call.1} parent=1 // pred_check_branch
      %36 = sbr.rel (0) target = $region13
    $region12: #{tpu_custom_call.1} parent=1 // pred_region
      _
    $region13: #{tpu_custom_call.1} parent=1 // pred_fallthru
      _
    // Predicated region
    $region14: #{tpu_custom_call.1} parent=1 // pred_check
      _
    $region15: #{tpu_custom_call.1} parent=1 // pred_check_branch
      %38 = sbr.rel (0) target = $region17
    $region16: #{tpu_custom_call.1} parent=1 // pred_region
      %39 = dma.done [#allocation3], 1024
    $region17: #{tpu_custom_call.1} parent=1 // pred_fallthru
      _
    // Predicated region
    $region18: #{tpu_custom_call.1} parent=1 // pred_check
      _
    $region19: #{tpu_custom_call.1} parent=1 // pred_check_branch
      %41 = sbr.rel (0) target = $region21
    $region20: #{tpu_custom_call.1} parent=1 // pred_region
      %42 = dma.done [#allocation6], 1024
    $region21: #{tpu_custom_call.1} parent=1 // pred_fallthru
      _
    %p44 = scmp.eq.s32.totalorder 0, 0
    // Predicated region
    $region22: #{tpu_custom_call.1} parent=1 // pred_check
      %p45 = pneg %p44
    $region23: #{tpu_custom_call.1} parent=1 // pred_check_branch
      %47 = sbr.rel (%p45) target = $region25
    $region24: #{tpu_custom_call.1} parent=1 // pred_region
      %48 = vst [vmem:[#allocation7] sm:$0x1] 4294967295
    $region25: #{tpu_custom_call.1} parent=1 // pred_fallthru
      _
    %v49 = vld [vmem:[#allocation2] sm:$0xf]
    %v50 = vld [vmem:[#allocation2 + $0x4] sm:$0xf]
    %v51 = vld [vmem:[#allocation2 + $0x8] sm:$0xf]
    %v52 = vld [vmem:[#allocation2 + $0xc] sm:$0xf]
    %v53 = vld [vmem:[#allocation2 + $0x10] sm:$0xf]
    %v54 = vld [vmem:[#allocation2 + $0x14] sm:$0xf]
    %v55 = vld [vmem:[#allocation2 + $0x18] sm:$0xf]
    %v56 = vld [vmem:[#allocation2 + $0x1c] sm:$0xf]
    %v57 = vld [vmem:[#allocation2 + $0x20] sm:$0xf]
    %v58 = vld [vmem:[#allocation2 + $0x24] sm:$0xf]
    %v59 = vld [vmem:[#allocation2 + $0x28] sm:$0xf]
    %v60 = vld [vmem:[#allocation2 + $0x2c] sm:$0xf]
    %v61 = vld [vmem:[#allocation2 + $0x30] sm:$0xf]
    %v62 = vld [vmem:[#allocation2 + $0x34] sm:$0xf]
    %v63 = vld [vmem:[#allocation2 + $0x38] sm:$0xf]
    %v64 = vld [vmem:[#allocation2 + $0x3c] sm:$0xf]
    %v65 = vld [vmem:[#allocation5] sm:$0xf]
    %v66 = vld [vmem:[#allocation5 + $0x4] sm:$0xf]
    %v67 = vld [vmem:[#allocation5 + $0x8] sm:$0xf]
    %v68 = vld [vmem:[#allocation5 + $0xc] sm:$0xf]
    %v69 = vld [vmem:[#allocation5 + $0x10] sm:$0xf]
    %v70 = vld [vmem:[#allocation5 + $0x14] sm:$0xf]
    %v71 = vld [vmem:[#allocation5 + $0x18] sm:$0xf]
    %v72 = vld [vmem:[#allocation5 + $0x1c] sm:$0xf]
    %v73 = vld [vmem:[#allocation5 + $0x20] sm:$0xf]
    %v74 = vld [vmem:[#allocation5 + $0x24] sm:$0xf]
    %v75 = vld [vmem:[#allocation5 + $0x28] sm:$0xf]
    %v76 = vld [vmem:[#allocation5 + $0x2c] sm:$0xf]
    %v77 = vld [vmem:[#allocation5 + $0x30] sm:$0xf]
    %v78 = vld [vmem:[#allocation5 + $0x34] sm:$0xf]
    %v79 = vld [vmem:[#allocation5 + $0x38] sm:$0xf]
    %v80 = vld [vmem:[#allocation5 + $0x3c] sm:$0xf]
    %v81 = vld [vmem:[%s2] sm:$0x1]
    %v98 = vunpack.c.l.b16 %v65
    %v99 = vunpack.c.l.b16 %v66
    %v100 = vunpack.c.l.b16 %v67
    %v101 = vunpack.c.l.b16 %v68
    %v102 = vunpack.c.l.b16 %v69
    %v103 = vunpack.c.l.b16 %v70
    %v104 = vunpack.c.l.b16 %v71
    %v105 = vunpack.c.l.b16 %v72
    %v106 = vunpack.c.l.b16 %v73
    %v107 = vunpack.c.l.b16 %v74
    %v108 = vunpack.c.l.b16 %v75
    %v109 = vunpack.c.l.b16 %v76
    %v110 = vunpack.c.l.b16 %v77
    %v111 = vunpack.c.l.b16 %v78
    %v112 = vunpack.c.l.b16 %v79
    %v113 = vunpack.c.l.b16 %v80
    %v114 = vpack.c.b16 %v99, %v98
    %v115 = vpack.c.b16 %v101, %v100
    %v116 = vpack.c.b16 %v103, %v102
    %v117 = vpack.c.b16 %v105, %v104
    %v118 = vpack.c.b16 %v107, %v106
    %v119 = vpack.c.b16 %v109, %v108
    %v120 = vpack.c.b16 %v111, %v110
    %v121 = vpack.c.b16 %v113, %v112
    %v146 = vunpack.c.l.b16 %v49
    %v147 = vunpack.c.l.b16 %v50
    %v148 = vunpack.c.l.b16 %v51
    %v149 = vunpack.c.l.b16 %v52
    %v150 = vunpack.c.l.b16 %v53
    %v151 = vunpack.c.l.b16 %v54
    %v152 = vunpack.c.l.b16 %v55
    %v153 = vunpack.c.l.b16 %v56
    %v154 = vunpack.c.l.b16 %v57
    %v155 = vunpack.c.l.b16 %v58
    %v156 = vunpack.c.l.b16 %v59
    %v157 = vunpack.c.l.b16 %v60
    %v158 = vunpack.c.l.b16 %v61
    %v159 = vunpack.c.l.b16 %v62
    %v160 = vunpack.c.l.b16 %v63
    %v161 = vunpack.c.l.b16 %v64
    %v162 = vpack.c.b16 %v147, %v146
    %v163 = vpack.c.b16 %v149, %v148
    %v164 = vpack.c.b16 %v151, %v150
    %v165 = vpack.c.b16 %v153, %v152
    %v166 = vpack.c.b16 %v155, %v154
    %v167 = vpack.c.b16 %v157, %v156
    %v168 = vpack.c.b16 %v159, %v158
    %v169 = vpack.c.b16 %v161, %v160
    %178 = vmatprep.subr.bf16.mxu0 0
    %179 = vmatpush1.bf16.xpose.msra.mxu0 %v162
    %180 = vmatprep.subr.bf16.mxu0 0
    %181 = vmatpush1.bf16.xpose.msra.mxu0 %v163
    %182 = vmatprep.subr.bf16.mxu0 0
    %183 = vmatpush1.bf16.xpose.msra.mxu0 %v164
    %184 = vmatprep.subr.bf16.mxu0 0
    %185 = vmatpush1.bf16.xpose.msra.mxu0 %v165
    %186 = vmatprep.subr.bf16.mxu0 0
    %187 = vmatpush1.bf16.xpose.msra.mxu0 %v166
    %188 = vmatprep.subr.bf16.mxu0 0
    %189 = vmatpush1.bf16.xpose.msra.mxu0 %v167
    %190 = vmatprep.subr.bf16.mxu0 0
    %191 = vmatpush1.bf16.xpose.msra.mxu0 %v168
    %192 = vmatprep.subr.bf16.mxu0 0
    %193 = vmatpush1.bf16.xpose.msra.mxu0 %v169
    %194 = vmatprep.subr.bf16.mxu0 0
    %195 = vmatpush1.bf16.xpose.msra.mxu0 0
    %196 = vmatprep.subr.bf16.mxu0 0
    %197 = vmatpush1.bf16.xpose.msra.mxu0 0
    %198 = vmatprep.subr.bf16.mxu0 0
    %199 = vmatpush1.bf16.xpose.msra.mxu0 0
    %200 = vmatprep.subr.bf16.mxu0 0
    %201 = vmatpush1.bf16.xpose.msra.mxu0 0
    %202 = vmatprep.subr.bf16.mxu0 0
    %203 = vmatpush1.bf16.xpose.msra.mxu0 0
    %204 = vmatprep.subr.bf16.mxu0 0
    %205 = vmatpush1.bf16.xpose.msra.mxu0 0
    %206 = vmatprep.subr.bf16.mxu0 0
    %207 = vmatpush1.bf16.xpose.msra.mxu0 0
    %208 = vmatprep.subr.bf16.mxu0 0
    %209 = vmatpush1.bf16.xpose.msra.mxu0 0
    %210 = vmatprep.mubr.bf16.mxu0 0
    %211 = vmatmul.mubr.bf16.gmra.mrb[0].mxu0 %v114
    %v212 = vpop.f32.mrb[0].mxu0
    %v213 = vadd.f32 0.0, %v212
    %v214 = vpop.f32.mrb[0].mxu0
    %v215 = vpop.f32.mrb[0].mxu0
    %v216 = vadd.f32 0.0, %v215
    %v217 = vpop.f32.mrb[0].mxu0
    %218 = vmatprep.mubr.bf16.mxu0 0
    %219 = vmatmul.mubr.bf16.gmra.mrb[0].mxu0 %v115
    %v220 = vpop.f32.mrb[0].mxu0
    %v221 = vadd.f32 0.0, %v220
    %v222 = vpop.f32.mrb[0].mxu0
    %v223 = vpop.f32.mrb[0].mxu0
    %v224 = vadd.f32 0.0, %v223
    %v225 = vpop.f32.mrb[0].mxu0
    %226 = vmatprep.mubr.bf16.mxu0 0
    %227 = vmatmul.mubr.bf16.gmra.mrb[0].mxu0 %v116
    %v228 = vpop.f32.mrb[0].mxu0
    %v229 = vadd.f32 0.0, %v228
    %v230 = vpop.f32.mrb[0].mxu0
    %v231 = vpop.f32.mrb[0].mxu0
    %v232 = vadd.f32 0.0, %v231
    %v233 = vpop.f32.mrb[0].mxu0
    %234 = vmatprep.mubr.bf16.mxu0 0
    %235 = vmatmul.mubr.bf16.gmra.mrb[0].mxu0 %v117
    %v236 = vpop.f32.mrb[0].mxu0
    %v237 = vadd.f32 0.0, %v236
    %v238 = vpop.f32.mrb[0].mxu0
    %v239 = vpop.f32.mrb[0].mxu0
    %v240 = vadd.f32 0.0, %v239
    %v241 = vpop.f32.mrb[0].mxu0
    %242 = vmatprep.mubr.bf16.mxu0 0
    %243 = vmatmul.mubr.bf16.gmra.mrb[0].mxu0 %v118
    %v244 = vpop.f32.mrb[0].mxu0
    %v245 = vadd.f32 0.0, %v244
    %v246 = vpop.f32.mrb[0].mxu0
    %v247 = vpop.f32.mrb[0].mxu0
    %v248 = vadd.f32 0.0, %v247
    %v249 = vpop.f32.mrb[0].mxu0
    %250 = vmatprep.mubr.bf16.mxu0 0
    %251 = vmatmul.mubr.bf16.gmra.mrb[0].mxu0 %v119
    %v252 = vpop.f32.mrb[0].mxu0
    %v253 = vadd.f32 0.0, %v252
    %v254 = vpop.f32.mrb[0].mxu0
    %v255 = vpop.f32.mrb[0].mxu0
    %v256 = vadd.f32 0.0, %v255
    %v257 = vpop.f32.mrb[0].mxu0
    %258 = vmatprep.mubr.bf16.mxu0 0
    %259 = vmatmul.mubr.bf16.gmra.mrb[0].mxu0 %v120
    %v260 = vpop.f32.mrb[0].mxu0
    %v261 = vadd.f32 0.0, %v260
    %v262 = vpop.f32.mrb[0].mxu0
    %v263 = vpop.f32.mrb[0].mxu0
    %v264 = vadd.f32 0.0, %v263
    %v265 = vpop.f32.mrb[0].mxu0
    %266 = vmatprep.mubr.bf16.mxu0 0
    %267 = vmatmul.mubr.bf16.gmra.mrb[0].mxu0 %v121
    %v268 = vpop.f32.mrb[0].mxu0
    %v269 = vadd.f32 0.0, %v268
    %v270 = vpop.f32.mrb[0].mxu0
    %v271 = vpop.f32.mrb[0].mxu0
    %v272 = vadd.f32 0.0, %v271
    %v273 = vpop.f32.mrb[0].mxu0
    %274 = vdwg.mxu0
    %v275 = vunpack.c.l.bf16 %v65
    %v276 = vunpack.c.l.bf16 %v66
    %v277 = vunpack.c.l.bf16 %v67
    %v278 = vunpack.c.l.bf16 %v68
    %v279 = vunpack.c.l.bf16 %v69
    %v280 = vunpack.c.l.bf16 %v70
    %v281 = vunpack.c.l.bf16 %v71
    %v282 = vunpack.c.l.bf16 %v72
    %v283 = vunpack.c.l.bf16 %v73
    %v284 = vunpack.c.l.bf16 %v74
    %v285 = vunpack.c.l.bf16 %v75
    %v286 = vunpack.c.l.bf16 %v76
    %v287 = vunpack.c.l.bf16 %v77
    %v288 = vunpack.c.l.bf16 %v78
    %v289 = vunpack.c.l.bf16 %v79
    %v290 = vunpack.c.l.bf16 %v80
    %v291 = vmul.f32 %v275, %v275
    %v292 = vmul.f32 %v276, %v276
    %v293 = vmul.f32 %v277, %v277
    %v294 = vmul.f32 %v278, %v278
    %v295 = vmul.f32 %v279, %v279
    %v296 = vmul.f32 %v280, %v280
    %v297 = vmul.f32 %v281, %v281
    %v298 = vmul.f32 %v282, %v282
    %v299 = vmul.f32 %v283, %v283
    %v300 = vmul.f32 %v284, %v284
    %v301 = vmul.f32 %v285, %v285
    %v302 = vmul.f32 %v286, %v286
    %v303 = vmul.f32 %v287, %v287
    %v304 = vmul.f32 %v288, %v288
    %v305 = vmul.f32 %v289, %v289
    %v306 = vmul.f32 %v290, %v290
    %307 = vadd.xlane.f32.xlu0 %v291
    %v308 = vpop.xlane.xlu0 %307
    %309 = vadd.xlane.f32.xlu0 %v292
    %v310 = vpop.xlane.xlu0 %309
    %311 = vadd.xlane.f32.xlu0 %v293
    %v312 = vpop.xlane.xlu0 %311
    %313 = vadd.xlane.f32.xlu0 %v294
    %v314 = vpop.xlane.xlu0 %313
    %315 = vadd.xlane.f32.xlu0 %v295
    %v316 = vpop.xlane.xlu0 %315
    %317 = vadd.xlane.f32.xlu0 %v296
    %v318 = vpop.xlane.xlu0 %317
    %319 = vadd.xlane.f32.xlu0 %v297
    %v320 = vpop.xlane.xlu0 %319
    %321 = vadd.xlane.f32.xlu0 %v298
    %v322 = vpop.xlane.xlu0 %321
    %323 = vadd.xlane.f32.xlu0 %v299
    %v324 = vpop.xlane.xlu0 %323
    %325 = vadd.xlane.f32.xlu0 %v300
    %v326 = vpop.xlane.xlu0 %325
    %327 = vadd.xlane.f32.xlu0 %v301
    %v328 = vpop.xlane.xlu0 %327
    %329 = vadd.xlane.f32.xlu0 %v302
    %v330 = vpop.xlane.xlu0 %329
    %331 = vadd.xlane.f32.xlu0 %v303
    %v332 = vpop.xlane.xlu0 %331
    %333 = vadd.xlane.f32.xlu0 %v304
    %v334 = vpop.xlane.xlu0 %333
    %335 = vadd.xlane.f32.xlu0 %v305
    %v336 = vpop.xlane.xlu0 %335
    %337 = vadd.xlane.f32.xlu0 %v306
    %v338 = vpop.xlane.xlu0 %337
    %v339 = vmul.f32 %v213, 2.0
    %v340 = vmul.f32 %v216, 2.0
    %v341 = vmul.f32 %v221, 2.0
    %v342 = vmul.f32 %v224, 2.0
    %v343 = vmul.f32 %v229, 2.0
    %v344 = vmul.f32 %v232, 2.0
    %v345 = vmul.f32 %v237, 2.0
    %v346 = vmul.f32 %v240, 2.0
    %v347 = vmul.f32 %v245, 2.0
    %v348 = vmul.f32 %v248, 2.0
    %v349 = vmul.f32 %v253, 2.0
    %v350 = vmul.f32 %v256, 2.0
    %v351 = vmul.f32 %v261, 2.0
    %v352 = vmul.f32 %v264, 2.0
    %v353 = vmul.f32 %v269, 2.0
    %v354 = vmul.f32 %v272, 2.0
    %v355 = vsub.f32 %v308, %v339
    %v356 = vsub.f32 %v310, %v340
    %v357 = vsub.f32 %v312, %v341
    %v358 = vsub.f32 %v314, %v342
    %v359 = vsub.f32 %v316, %v343
    %v360 = vsub.f32 %v318, %v344
    %v361 = vsub.f32 %v320, %v345
    %v362 = vsub.f32 %v322, %v346
    %v363 = vsub.f32 %v324, %v347
    %v364 = vsub.f32 %v326, %v348
    %v365 = vsub.f32 %v328, %v349
    %v366 = vsub.f32 %v330, %v350
    %v367 = vsub.f32 %v332, %v351
    %v368 = vsub.f32 %v334, %v352
    %v369 = vsub.f32 %v336, %v353
    %v370 = vsub.f32 %v338, %v354
    %v372 = vlaneseq
    %v373 = vshrl.u32 %v372, 7
    %v374 = vsub.s32 0, %v373
    %v375 = vrot.slane %v81, %v374
    %v377 = vadd.f32 %v355, %v375
    %v378 = vadd.f32 %v356, %v375
    %v379 = vadd.f32 %v357, %v375
    %v380 = vadd.f32 %v358, %v375
    %v381 = vadd.f32 %v359, %v375
    %v382 = vadd.f32 %v360, %v375
    %v383 = vadd.f32 %v361, %v375
    %v384 = vadd.f32 %v362, %v375
    %v385 = vadd.f32 %v363, %v375
    %v386 = vadd.f32 %v364, %v375
    %v387 = vadd.f32 %v365, %v375
    %v388 = vadd.f32 %v366, %v375
    %v389 = vadd.f32 %v367, %v375
    %v390 = vadd.f32 %v368, %v375
    %v391 = vadd.f32 %v369, %v375
    %v392 = vadd.f32 %v370, %v375
    %vm393 = vcmp.eq.f32.partialorder %v377, 0.0
    %vm394 = vcmp.eq.f32.partialorder %v378, 0.0
    %vm395 = vcmp.eq.f32.partialorder %v379, 0.0
    %vm396 = vcmp.eq.f32.partialorder %v380, 0.0
    %vm397 = vcmp.eq.f32.partialorder %v381, 0.0
    %vm398 = vcmp.eq.f32.partialorder %v382, 0.0
    %vm399 = vcmp.eq.f32.partialorder %v383, 0.0
    %vm400 = vcmp.eq.f32.partialorder %v384, 0.0
    %vm401 = vcmp.eq.f32.partialorder %v385, 0.0
    %vm402 = vcmp.eq.f32.partialorder %v386, 0.0
    %vm403 = vcmp.eq.f32.partialorder %v387, 0.0
    %vm404 = vcmp.eq.f32.partialorder %v388, 0.0
    %vm405 = vcmp.eq.f32.partialorder %v389, 0.0
    %vm406 = vcmp.eq.f32.partialorder %v390, 0.0
    %vm407 = vcmp.eq.f32.partialorder %v391, 0.0
    %vm408 = vcmp.eq.f32.partialorder %v392, 0.0
    %s409 = smul.u32 0, 128
    %v410 = vlaneseq
    %v411 = vshrl.u32 %v410, 7
    %v412 = vadd.s32 %v411, 8
    %v413 = vadd.s32 %v411, 16
    %v414 = vadd.s32 %v411, 24
    %v415 = vadd.s32 %v411, 32
    %v416 = vadd.s32 %v411, 40
    %v417 = vadd.s32 %v411, 48
    %v418 = vadd.s32 %v411, 56
    %v419 = vadd.s32 %v411, 64
    %v420 = vadd.s32 %v411, 72
    %v421 = vadd.s32 %v411, 80
    %v422 = vadd.s32 %v411, 88
    %v423 = vadd.s32 %v411, 96
    %v424 = vadd.s32 %v411, 104
    %v425 = vadd.s32 %v411, 112
    %v426 = vadd.s32 %v411, 120
    %v427 = vstv %s409
    %v428 = vadd.s32 %v427, %v411
    %v429 = vadd.s32 %v427, %v412
    %v430 = vadd.s32 %v427, %v413
    %v431 = vadd.s32 %v427, %v414
    %v432 = vadd.s32 %v427, %v415
    %v433 = vadd.s32 %v427, %v416
    %v434 = vadd.s32 %v427, %v417
    %v435 = vadd.s32 %v427, %v418
    %v436 = vadd.s32 %v427, %v419
    %v437 = vadd.s32 %v427, %v420
    %v438 = vadd.s32 %v427, %v421
    %v439 = vadd.s32 %v427, %v422
    %v440 = vadd.s32 %v427, %v423
    %v441 = vadd.s32 %v427, %v424
    %v442 = vadd.s32 %v427, %v425
    %v443 = vadd.s32 %v427, %v426
    %v444 = vsel %vm393, %v428, 4294967295
    %v445 = vsel %vm394, %v429, 4294967295
    %v446 = vsel %vm395, %v430, 4294967295
    %v447 = vsel %vm396, %v431, 4294967295
    %v448 = vsel %vm397, %v432, 4294967295
    %v449 = vsel %vm398, %v433, 4294967295
    %v450 = vsel %vm399, %v434, 4294967295
    %v451 = vsel %vm400, %v435, 4294967295
    %v452 = vsel %vm401, %v436, 4294967295
    %v453 = vsel %vm402, %v437, 4294967295
    %v454 = vsel %vm403, %v438, 4294967295
    %v455 = vsel %vm404, %v439, 4294967295
    %v456 = vsel %vm405, %v440, 4294967295
    %v457 = vsel %vm406, %v441, 4294967295
    %v458 = vsel %vm407, %v442, 4294967295
    %v459 = vsel %vm408, %v443, 4294967295
    %v460 = vld [vmem:[#allocation7] sm:$0x1]
    %vm461 = vcmp.gt.s32.totalorder %v444, %v448
    %v462 = vsel %vm461, %v444, %v448
    %vm463 = vcmp.gt.s32.totalorder %v445, %v449
    %v464 = vsel %vm463, %v445, %v449
    %vm465 = vcmp.gt.s32.totalorder %v446, %v450
    %v466 = vsel %vm465, %v446, %v450
    %vm467 = vcmp.gt.s32.totalorder %v447, %v451
    %v468 = vsel %vm467, %v447, %v451
    %vm469 = vcmp.gt.s32.totalorder %v462, %v452
    %v470 = vsel %vm469, %v462, %v452
    %vm471 = vcmp.gt.s32.totalorder %v464, %v453
    %v472 = vsel %vm471, %v464, %v453
    %vm473 = vcmp.gt.s32.totalorder %v466, %v454
    %v474 = vsel %vm473, %v466, %v454
    %vm475 = vcmp.gt.s32.totalorder %v468, %v455
    %v476 = vsel %vm475, %v468, %v455
    %vm477 = vcmp.gt.s32.totalorder %v470, %v456
    %v478 = vsel %vm477, %v470, %v456
    %vm479 = vcmp.gt.s32.totalorder %v472, %v457
    %v480 = vsel %vm479, %v472, %v457
    %vm481 = vcmp.gt.s32.totalorder %v474, %v458
    %v482 = vsel %vm481, %v474, %v458
    %vm483 = vcmp.gt.s32.totalorder %v476, %v459
    %v484 = vsel %vm483, %v476, %v459
    %vm485 = vcmp.gt.s32.totalorder %v478, %v480
    %v486 = vsel %vm485, %v478, %v480
    %vm487 = vcmp.gt.s32.totalorder %v482, %v484
    %v488 = vsel %vm487, %v482, %v484
    %vm489 = vcmp.gt.s32.totalorder %v486, %v488
    %v490 = vsel %vm489, %v486, %v488
    %v491 = vrot.slane %v490, 4
    %vm492 = vcmp.gt.s32.totalorder %v490, %v491
    %v493 = vsel %vm492, %v490, %v491
    %v494 = vrot.slane %v493, 2
    %vm495 = vcmp.gt.s32.totalorder %v493, %v494
    %v496 = vsel %vm495, %v493, %v494
    %v497 = vrot.slane %v496, 1
    %vm498 = vcmp.gt.s32.totalorder %v496, %v497
    %v499 = vsel %vm498, %v496, %v497
    %vm500 = vcmp.gt.s32.totalorder %v460, %v499
    %v501 = vsel %vm500, %v460, %v499
    %502 = vst [vmem:[#allocation7] sm:$0x1] %v501
    // Predicated region
    $region26: #{tpu_custom_call.1} parent=1 // pred_check
      _
    $region27: #{tpu_custom_call.1} parent=1 // pred_check_branch
      %504 = sbr.rel (0) target = $region29
    $region28: #{tpu_custom_call.1} parent=1 // pred_region
      %s506 = ssub.s32 16, 16
      %507 = vsyncadd [#allocation4], %s506
      %s509 = sshll.u32 [#allocation7], 4
      %s510 = int_to_ptr.vmem [resolvable:$true] %s509
      %512 = dma.vmem_to_hbm [thread:$0]  %s510, 16, %s3, [#allocation4]
    $region29: #{tpu_custom_call.1} parent=1 // pred_fallthru
      _
    // Predicated region
    $region30: #{tpu_custom_call.1} parent=1 // pred_check
      _
    $region31: #{tpu_custom_call.1} parent=1 // pred_check_branch
      %514 = sbr.rel (0) target = $region33
    $region32: #{tpu_custom_call.1} parent=1 // pred_region
      %515 = dma.done [#allocation4], 16
    $region33: #{tpu_custom_call.1} parent=1 // pred_fallthru
      _
    %516 = vsyncpa [#allocation3], 1
    %517 = vsyncpa [#allocation6], 1
    %518 = vsyncpa [#allocation4], 1

</llo_original>
